<compile_context>
chip_gen: v7x
topology: tpu7x:2x2x1
jax: 0.10.0
libtpu: 0.0.40
codegen_flags: <defaults>
</compile_context>

<pallas_src>
import jax
import jax.numpy as jnp
from jax.experimental import pallas as pl
from jax.experimental.pallas import tpu as pltpu

_MIB = 1024 * 1024


def _round_up(n, m):
    return ((n + m - 1) // m) * m


def _vmem_cap_bytes():
    """Physical VMEM minus ~16 MiB headroom, generation-aware."""
    try:
        cap = int(pltpu.get_tpu_info().vmem_capacity_bytes)
    except Exception:
        cap = 64 * _MIB  # conservative fallback: v7x per-TensorCore VMEM
    return max(cap - 16 * _MIB, 16 * _MIB)


def _vmem_budget_bytes(tile_rows, E, C, x_itemsize, w_itemsize, single_buffer_weights):
    wbuf = 1 if single_buffer_weights else 2
    # double-buffered streaming tiles: x (T,E), out (T,E), cond (T,C)
    stream = 2 * tile_rows * (2 * E + C) * x_itemsize
    # grid-resident params: w1 (C,2E), b1 (2E), w2 (2E,2E), b2 (2E)
    weights = wbuf * (2 * E * C + 2 * E + 4 * E * E + 2 * E) * w_itemsize
    # f32 in-kernel intermediates: x_f32 (T,E), h (T,2E), y/scale/shift (T,2E)
    interm = tile_rows * (5 * E) * 4
    return stream + weights + interm


# --------------------------------------------------------------------------
# Kernels
# --------------------------------------------------------------------------

def adaln_fused_kernel(x_ref, cond_ref, w1_ref, b1_ref, w2_ref, b2_ref, out_ref):
    """Fused second matmul: (TILE, 2E) @ (2E, 2E); use when E % 128 == 0."""
    E = out_ref.shape[-1]

    # cond MLP: Linear(C -> 2E) -> SiLU -> Linear(2E -> 2E)
    cond = cond_ref[...].astype(w1_ref.dtype)
    h = jnp.dot(cond, w1_ref[...], preferred_element_type=jnp.float32)
    h = h + b1_ref[...].astype(jnp.float32)
    h = h * jax.nn.sigmoid(h)                 # SiLU in f32
    h = h.astype(w2_ref.dtype)                # MXU operand dtype = weight dtype

    y = jnp.dot(h, w2_ref[...], preferred_element_type=jnp.float32)
    y = y + b2_ref[...].astype(jnp.float32)   # affine constants folded into b2
    scale = y[:, :E]                          # 128-lane-aligned static slices
    shift = y[:, E:]

    # LayerNorm over E, two-pass stats, f32
    x = x_ref[...].astype(jnp.float32)
    mean = jnp.mean(x, axis=-1, keepdims=True)
    d = x - mean
    var = jnp.mean(d * d, axis=-1, keepdims=True)
    norm = d * jax.lax.rsqrt(var + 1e-5)

    out_ref[...] = (norm * scale + shift).astype(out_ref.dtype)


def adaln_split_kernel(x_ref, cond_ref, w1_ref, b1_ref, w2s_ref, w2h_ref,
                       sb_ref, hb_ref, out_ref):
    """Split-head second matmul (no lane slicing); used when E % 128 != 0."""
    cond = cond_ref[...].astype(w1_ref.dtype)
    h = jnp.dot(cond, w1_ref[...], preferred_element_type=jnp.float32)
    h = h + b1_ref[...].astype(jnp.float32)
    h = h * jax.nn.sigmoid(h)
    h = h.astype(w2s_ref.dtype)

    scale = jnp.dot(h, w2s_ref[...], preferred_element_type=jnp.float32) \
        + sb_ref[...].astype(jnp.float32)
    shift = jnp.dot(h, w2h_ref[...], preferred_element_type=jnp.float32) \
        + hb_ref[...].astype(jnp.float32)

    x = x_ref[...].astype(jnp.float32)
    mean = jnp.mean(x, axis=-1, keepdims=True)
    d = x - mean
    var = jnp.mean(d * d, axis=-1, keepdims=True)
    norm = d * jax.lax.rsqrt(var + 1e-5)

    out_ref[...] = (norm * scale + shift).astype(out_ref.dtype)


# --------------------------------------------------------------------------
# Parameter preparation (torch layout -> kernel layout)
# --------------------------------------------------------------------------

def prepare_params(w1_t, b1_t, w2_t, b2_t, gamma, beta, param_dtype=None):
    """torch layouts: w1_t (2E, C), b1_t (2E,), w2_t (2E, 2E), b2_t (2E,),
    gamma/beta (E,).  Produces (in, out) matmul layouts, folds the affine
    constants (+1, gamma, beta) into the second-layer bias, and optionally
    stores the weight matrices in bf16 (biases stay f32)."""
    E = gamma.shape[0]
    w1 = w1_t.T                                   # (C, 2E)
    w2 = w2_t.T                                   # (2E, 2E) (in, out)
    if param_dtype is not None:
        w1 = w1.astype(param_dtype)
        w2 = w2.astype(param_dtype)

    b1 = b1_t.reshape(1, -1).astype(jnp.float32)                  # (1, 2E)
    scale_bias = (b2_t[:E] + gamma + 1.0).astype(jnp.float32)     # (E,)
    shift_bias = (b2_t[E:] + beta).astype(jnp.float32)            # (E,)
    b2 = jnp.concatenate([scale_bias, shift_bias]).reshape(1, 2 * E)

    return dict(
        w1=w1, b1=b1, w2=w2, b2=b2,
        w2_scale=w2[:, :E], w2_shift=w2[:, E:],
        scale_bias=scale_bias.reshape(1, E),
        shift_bias=shift_bias.reshape(1, E),
    )


# --------------------------------------------------------------------------
# Forward wrapper
# --------------------------------------------------------------------------

def adaln_forward(x, cond, params, *, tile_rows=None):
    """x: (B, S, E), cond: (B, S, C). Returns (B, S, E)."""
    B, S, E = x.shape
    C = cond.shape[-1]
    N = B * S
    fused = (E % 128 == 0)

    x2 = x.reshape(N, E)
    c2 = cond.reshape(N, C)

    x_itemsize = x.dtype.itemsize
    w_itemsize = params["w2"].dtype.itemsize

    # --- row-tile selection -------------------------------------------------
    if tile_rows is None:
        tile_rows = 2048 if E <= 128 else 1024 if E <= 256 else 512 if E <= 512 else 256
    tile_rows = _round_up(max(16, min(int(tile_rows), _round_up(N, 16))), 16)
    if N >= 1024:
        # keep >= ~4 grid steps so both v7x TensorCores stay fed
        tile_rows = min(tile_rows, max(256, _round_up(pl.cdiv(N, 4), 16)))
    cap = _vmem_cap_bytes()
    while tile_rows > 16 and _vmem_budget_bytes(
            tile_rows, E, C, x_itemsize, w_itemsize, True) > cap:
        tile_rows = max(16, _round_up(tile_rows // 2, 16))

    grid = (pl.cdiv(N, tile_rows),)

    def row_spec(last):
        return pl.BlockSpec((tile_rows, last), lambda i: (i, 0))

    def run(single_buffer_weights):
        def w_spec(shape):
            if single_buffer_weights and hasattr(pl, "Buffered"):
                try:
                    return pl.BlockSpec(shape, lambda i: (0, 0),
                                        pipeline_mode=pl.Buffered(1))
                except (TypeError, AttributeError):
                    pass
            return pl.BlockSpec(shape, lambda i: (0, 0))

        if fused:
            kernel = adaln_fused_kernel
            w_args = (params["w1"], params["b1"], params["w2"], params["b2"])
            w_shapes = [(C, 2 * E), (1, 2 * E), (2 * E, 2 * E), (1, 2 * E)]
        else:
            kernel = adaln_split_kernel
            w_args = (params["w1"], params["b1"],
                      params["w2_scale"], params["w2_shift"],
                      params["scale_bias"], params["shift_bias"])
            w_shapes = [(C, 2 * E), (1, 2 * E), (2 * E, E), (2 * E, E),
                        (1, E), (1, E)]

        budget = _vmem_budget_bytes(tile_rows, E, C, x_itemsize, w_itemsize,
                                    single_buffer_weights)
        vmem_limit = int(min(cap, max(2 * budget, 32 * _MIB)))

        return pl.pallas_call(
            kernel,
            out_shape=jax.ShapeDtypeStruct((N, E), x.dtype),
            grid_spec=pltpu.PrefetchScalarGridSpec(
                num_scalar_prefetch=0,
                grid=grid,
                in_specs=[row_spec(E), row_spec(C)] + [w_spec(s) for s in w_shapes],
                out_specs=row_spec(E),
            ),
            compiler_params=pltpu.CompilerParams(
                dimension_semantics=("parallel",),
                vmem_limit_bytes=vmem_limit,
            ),
        )(x2, c2, *w_args)

    try:
        out = run(True)
    except Exception:
        # Buffered(1) unsupported on this jax version -> default double-buffered
        # weights (identical results, just more VMEM).
        out = run(False)

    return out.reshape(B, S, E)


# --------------------------------------------------------------------------
# Pure-JAX reference (torch param layout), high-precision matmuls
# --------------------------------------------------------------------------

def adaln_reference(x, cond, w1_t, b1_t, w2_t, b2_t, gamma, beta):
    hp = jax.lax.Precision.HIGHEST
    h = jnp.dot(cond, w1_t.T, precision=hp) + b1_t
    h = h * jax.nn.sigmoid(h)
    y = jnp.dot(h, w2_t.T, precision=hp) + b2_t
    E = x.shape[-1]
    w_c = y[..., :E] + 1.0
    b_c = y[..., E:]
    mean = jnp.mean(x, axis=-1, keepdims=True)
    var = jnp.mean((x - mean) ** 2, axis=-1, keepdims=True)
    norm = (x - mean) / jnp.sqrt(var + 1e-5)
    return norm * (gamma + w_c) + (beta + b_c)


# --------------------------------------------------------------------------
# Demo / correctness checks
# --------------------------------------------------------------------------

if __name__ == "__main__":
    def make_case(B, S, E, C, seed_key):
        k_x, k_c, k_w1, k_b1, k_w2, k_b2 = jax.random.split(seed_key, 6)
        x = jax.random.normal(k_x, (B, S, E), jnp.float32)
        cond = jax.random.normal(k_c, (B, S, C), jnp.float32)
        w1_t = jax.random.normal(k_w1, (2 * E, C), jnp.float32) * 0.1
        b1_t = jax.random.normal(k_b1, (2 * E,), jnp.float32) * 0.1
        w2_t = jax.random.normal(k_w2, (2 * E, 2 * E), jnp.float32) * 0.1
        b2_t = jax.random.normal(k_b2, (2 * E,), jnp.float32) * 0.1
        gamma = jnp.ones((E,), jnp.float32)     # AdaLN.weight init
        beta = jnp.zeros((E,), jnp.float32)     # AdaLN.bias init
        return x, cond, (w1_t, b1_t, w2_t, b2_t, gamma, beta)

    k1, k2, k3 = jax.random.split(jax.random.PRNGKey(0), 3)

    # Case 1: fused-head path (E % 128 == 0), f32 params.
    x, cond, tp = make_case(2, 16, 128, 64, k1)
    params = prepare_params(*tp)
    out = jax.block_until_ready(adaln_forward(x, cond, params))
    ref = adaln_reference(x, cond, *tp)
    assert out.shape == ref.shape
    err = float(jnp.max(jnp.abs(out - ref)))
    assert err < 2e-3, f"fused/f32 mismatch, max abs err = {err}"

    # Case 2: split-head path (E % 128 != 0) with a partial last row tile.
    x, cond, tp = make_case(2, 20, 64, 32, k2)          # N=40, tile=16 -> partial tail
    params = prepare_params(*tp)
    out = jax.block_until_ready(adaln_forward(x, cond, params, tile_rows=16))
    ref = adaln_reference(x, cond, *tp)
    err = float(jnp.max(jnp.abs(out - ref)))
    assert err < 2e-3, f"split/f32 mismatch, max abs err = {err}"

    # Case 3: bf16 weights (halved HBM traffic, MXU-native); loose tolerance
    # accounts for bf16 weight/activation quantization.
    x, cond, tp = make_case(2, 16, 128, 64, k3)
    params = prepare_params(*tp, param_dtype=jnp.bfloat16)
    out = jax.block_until_ready(adaln_forward(x, cond, params))
    ref = adaln_reference(x, cond, *tp)
    err = float(jnp.max(jnp.abs(out - ref)))
    assert err < 2e-1, f"fused/bf16 mismatch, max abs err = {err}"

    print("KERNEL_OK")
</pallas_src>

<mosaic_0001>
module attributes {stable_mosaic.version = 11 : i64} {
  func.func @adaln_fused_kernel(%arg0: i32, %arg1: memref<32x128xf32, #tpu.memory_space<vmem>>, %arg2: memref<32x64xf32, #tpu.memory_space<vmem>>, %arg3: memref<64x256xf32, #tpu.memory_space<vmem>>, %arg4: memref<1x256xf32, #tpu.memory_space<vmem>>, %arg5: memref<256x256xf32, #tpu.memory_space<vmem>>, %arg6: memref<1x256xf32, #tpu.memory_space<vmem>>, %arg7: memref<32x128xf32, #tpu.memory_space<vmem>>) attributes {dimension_semantics = [#tpu.dimension_semantics<parallel>], iteration_bounds = array<i64: 1>, scalar_prefetch = 0 : i64, scratch_operands = 0 : i64, tpu.core_type = #tpu.core_type<tc>, window_params = [{transform_indices = @transform_0, window_bounds = array<i64: 32, 128>}, {transform_indices = @transform_1, window_bounds = array<i64: 32, 64>}, {pipeline_mode = #tpu.pipeline_mode<synchronous>, transform_indices = @transform_2, window_bounds = array<i64: 64, 256>}, {pipeline_mode = #tpu.pipeline_mode<synchronous>, transform_indices = @transform_3, window_bounds = array<i64: 1, 256>}, {pipeline_mode = #tpu.pipeline_mode<synchronous>, transform_indices = @transform_4, window_bounds = array<i64: 256, 256>}, {pipeline_mode = #tpu.pipeline_mode<synchronous>, transform_indices = @transform_5, window_bounds = array<i64: 1, 256>}, {transform_indices = @transform_6, window_bounds = array<i64: 32, 128>}]} {
    %c0 = arith.constant 0 : index
    %c0_0 = arith.constant 0 : index
    %0 = vector.load %arg2[%c0, %c0_0] : memref<32x64xf32, #tpu.memory_space<vmem>>, vector<32x64xf32>
    %c0_1 = arith.constant 0 : index
    %c0_2 = arith.constant 0 : index
    %1 = vector.load %arg3[%c0_1, %c0_2] : memref<64x256xf32, #tpu.memory_space<vmem>>, vector<64x256xf32>
    %cst = arith.constant dense<0.000000e+00> : vector<32x256xf32>
    %2 = tpu.matmul %0, %1, %cst {dimension_numbers = #tpu.dot_dimension_numbers<[1], [0], [0], [1], [0, 0, 1, 1], [], []>} : vector<32x64xf32>, vector<64x256xf32>, vector<32x256xf32> -> vector<32x256xf32>
    %c0_3 = arith.constant 0 : index
    %c0_4 = arith.constant 0 : index
    %3 = vector.load %arg4[%c0_3, %c0_4] : memref<1x256xf32, #tpu.memory_space<vmem>>, vector<1x256xf32>
    %4 = vector.broadcast %3 : vector<1x256xf32> to vector<32x256xf32>
    %5 = arith.addf %2, %4 : vector<32x256xf32>
    %6 = arith.negf %5 : vector<32x256xf32>
    %7 = math.exp %6 : vector<32x256xf32>
    %cst_5 = arith.constant 1.000000e+00 : f32
    %8 = vector.broadcast %cst_5 : f32 to vector<32x256xf32>
    %9 = arith.addf %8, %7 : vector<32x256xf32>
    %10 = arith.divf %8, %9 : vector<32x256xf32>
    %11 = arith.mulf %5, %10 : vector<32x256xf32>
    %c0_6 = arith.constant 0 : index
    %c0_7 = arith.constant 0 : index
    %12 = vector.load %arg5[%c0_6, %c0_7] : memref<256x256xf32, #tpu.memory_space<vmem>>, vector<256x256xf32>
    %cst_8 = arith.constant dense<0.000000e+00> : vector<32x256xf32>
    %13 = tpu.matmul %11, %12, %cst_8 {dimension_numbers = #tpu.dot_dimension_numbers<[1], [0], [0], [1], [0, 0, 1, 1], [], []>} : vector<32x256xf32>, vector<256x256xf32>, vector<32x256xf32> -> vector<32x256xf32>
    %c0_9 = arith.constant 0 : index
    %c0_10 = arith.constant 0 : index
    %14 = vector.load %arg6[%c0_9, %c0_10] : memref<1x256xf32, #tpu.memory_space<vmem>>, vector<1x256xf32>
    %15 = vector.broadcast %14 : vector<1x256xf32> to vector<32x256xf32>
    %16 = arith.addf %13, %15 : vector<32x256xf32>
    %17 = vector.extract_strided_slice %16 {offsets = [0, 0], sizes = [32, 128], strides = [1, 1]} : vector<32x256xf32> to vector<32x128xf32>
    %18 = vector.extract_strided_slice %16 {offsets = [0, 128], sizes = [32, 128], strides = [1, 1]} : vector<32x256xf32> to vector<32x128xf32>
    %c0_11 = arith.constant 0 : index
    %c0_12 = arith.constant 0 : index
    %19 = vector.load %arg1[%c0_11, %c0_12] : memref<32x128xf32, #tpu.memory_space<vmem>>, vector<32x128xf32>
    %cst_13 = arith.constant dense<0.000000e+00> : vector<32xf32>
    %20 = vector.multi_reduction <add>, %19, %cst_13 [1] : vector<32x128xf32> to vector<32xf32>
    %21 = vector.shape_cast %20 : vector<32xf32> to vector<32x1xf32>
    %cst_14 = arith.constant 1.280000e+02 : f32
    %22 = vector.broadcast %cst_14 : f32 to vector<32x1xf32>
    %23 = arith.divf %21, %22 : vector<32x1xf32>
    %24 = vector.broadcast %23 : vector<32x1xf32> to vector<32x128xf32>
    %25 = arith.subf %19, %24 : vector<32x128xf32>
    %26 = arith.mulf %25, %25 : vector<32x128xf32>
    %cst_15 = arith.constant dense<0.000000e+00> : vector<32xf32>
    %27 = vector.multi_reduction <add>, %26, %cst_15 [1] : vector<32x128xf32> to vector<32xf32>
    %28 = vector.shape_cast %27 : vector<32xf32> to vector<32x1xf32>
    %cst_16 = arith.constant 1.280000e+02 : f32
    %29 = vector.broadcast %cst_16 : f32 to vector<32x1xf32>
    %30 = arith.divf %28, %29 : vector<32x1xf32>
    %cst_17 = arith.constant 9.99999974E-6 : f32
    %31 = vector.broadcast %cst_17 : f32 to vector<32x1xf32>
    %32 = arith.addf %30, %31 : vector<32x1xf32>
    %33 = math.rsqrt %32 : vector<32x1xf32>
    %34 = vector.broadcast %33 : vector<32x1xf32> to vector<32x128xf32>
    %35 = arith.mulf %25, %34 : vector<32x128xf32>
    %36 = arith.mulf %35, %17 : vector<32x128xf32>
    %37 = arith.addf %36, %18 : vector<32x128xf32>
    %c0_18 = arith.constant 0 : index
    %c0_19 = arith.constant 0 : index
    %38 = vector.load %arg7[%c0_18, %c0_19] : memref<32x128xf32, #tpu.memory_space<vmem>>, vector<32x128xf32>
    tpu.vector_store %arg7[%c0_18, %c0_19], %37 {strides = array<i32>} : memref<32x128xf32, #tpu.memory_space<vmem>>, vector<32x128xf32>,
    return
  }
  func.func @transform_0(%arg0: i32) -> (i32, i32) {
    %c0_i32 = arith.constant 0 : i32
    %c0_i32_0 = arith.constant 0 : i32
    return %arg0, %c0_i32 : i32, i32
  }
  func.func @transform_1(%arg0: i32) -> (i32, i32) {
    %c0_i32 = arith.constant 0 : i32
    %c0_i32_0 = arith.constant 0 : i32
    return %arg0, %c0_i32 : i32, i32
  }
  func.func @transform_2(%arg0: i32) -> (i32, i32) {
    %c0_i32 = arith.constant 0 : i32
    %c0_i32_0 = arith.constant 0 : i32
    %c0_i32_1 = arith.constant 0 : i32
    return %c0_i32, %c0_i32_0 : i32, i32
  }
  func.func @transform_3(%arg0: i32) -> (i32, i32) {
    %c0_i32 = arith.constant 0 : i32
    %c0_i32_0 = arith.constant 0 : i32
    %c0_i32_1 = arith.constant 0 : i32
    return %c0_i32, %c0_i32_0 : i32, i32
  }
  func.func @transform_4(%arg0: i32) -> (i32, i32) {
    %c0_i32 = arith.constant 0 : i32
    %c0_i32_0 = arith.constant 0 : i32
    %c0_i32_1 = arith.constant 0 : i32
    return %c0_i32, %c0_i32_0 : i32, i32
  }
  func.func @transform_5(%arg0: i32) -> (i32, i32) {
    %c0_i32 = arith.constant 0 : i32
    %c0_i32_0 = arith.constant 0 : i32
    %c0_i32_1 = arith.constant 0 : i32
    return %c0_i32, %c0_i32_0 : i32, i32
  }
  func.func @transform_6(%arg0: i32) -> (i32, i32) {
    %c0_i32 = arith.constant 0 : i32
    %c0_i32_0 = arith.constant 0 : i32
    return %arg0, %c0_i32 : i32, i32
  }
}

module attributes {stable_mosaic.version = 11 : i64} {
  func.func @adaln_fused_kernel(%arg0: i32, %arg1: memref<32x128xf32, #tpu.memory_space<vmem>>, %arg2: memref<32x64xf32, #tpu.memory_space<vmem>>, %arg3: memref<64x256xf32, #tpu.memory_space<vmem>>, %arg4: memref<1x256xf32, #tpu.memory_space<vmem>>, %arg5: memref<256x256xf32, #tpu.memory_space<vmem>>, %arg6: memref<1x256xf32, #tpu.memory_space<vmem>>, %arg7: memref<32x128xf32, #tpu.memory_space<vmem>>) attributes {dimension_semantics = [#tpu.dimension_semantics<parallel>], iteration_bounds = array<i64: 1>, scalar_prefetch = 0 : i64, scratch_operands = 0 : i64, tpu.core_type = #tpu.core_type<tc>, window_params = [{transform_indices = @transform_0, window_bounds = array<i64: 32, 128>}, {transform_indices = @transform_1, window_bounds = array<i64: 32, 64>}, {pipeline_mode = #tpu.pipeline_mode<synchronous>, transform_indices = @transform_2, window_bounds = array<i64: 64, 256>}, {pipeline_mode = #tpu.pipeline_mode<synchronous>, transform_indices = @transform_3, window_bounds = array<i64: 1, 256>}, {pipeline_mode = #tpu.pipeline_mode<synchronous>, transform_indices = @transform_4, window_bounds = array<i64: 256, 256>}, {pipeline_mode = #tpu.pipeline_mode<synchronous>, transform_indices = @transform_5, window_bounds = array<i64: 1, 256>}, {transform_indices = @transform_6, window_bounds = array<i64: 32, 128>}]} {
    %c0 = arith.constant 0 : index
    %c0_0 = arith.constant 0 : index
    %0 = vector.load %arg2[%c0, %c0_0] : memref<32x64xf32, #tpu.memory_space<vmem>>, vector<32x64xf32>
    %c0_1 = arith.constant 0 : index
    %c0_2 = arith.constant 0 : index
    %1 = vector.load %arg3[%c0_1, %c0_2] : memref<64x256xf32, #tpu.memory_space<vmem>>, vector<64x256xf32>
    %cst = arith.constant dense<0.000000e+00> : vector<32x256xf32>
    %2 = tpu.matmul %0, %1, %cst {dimension_numbers = #tpu.dot_dimension_numbers<[1], [0], [0], [1], [0, 0, 1, 1], [], []>} : vector<32x64xf32>, vector<64x256xf32>, vector<32x256xf32> -> vector<32x256xf32>
    %c0_3 = arith.constant 0 : index
    %c0_4 = arith.constant 0 : index
    %3 = vector.load %arg4[%c0_3, %c0_4] : memref<1x256xf32, #tpu.memory_space<vmem>>, vector<1x256xf32>
    %4 = vector.broadcast %3 : vector<1x256xf32> to vector<32x256xf32>
    %5 = arith.addf %2, %4 : vector<32x256xf32>
    %6 = arith.negf %5 : vector<32x256xf32>
    %7 = math.exp %6 : vector<32x256xf32>
    %cst_5 = arith.constant 1.000000e+00 : f32
    %8 = vector.broadcast %cst_5 : f32 to vector<32x256xf32>
    %9 = arith.addf %8, %7 : vector<32x256xf32>
    %10 = arith.divf %8, %9 : vector<32x256xf32>
    %11 = arith.mulf %5, %10 : vector<32x256xf32>
    %c0_6 = arith.constant 0 : index
    %c0_7 = arith.constant 0 : index
    %12 = vector.load %arg5[%c0_6, %c0_7] : memref<256x256xf32, #tpu.memory_space<vmem>>, vector<256x256xf32>
    %cst_8 = arith.constant dense<0.000000e+00> : vector<32x256xf32>
    %13 = tpu.matmul %11, %12, %cst_8 {dimension_numbers = #tpu.dot_dimension_numbers<[1], [0], [0], [1], [0, 0, 1, 1], [], []>} : vector<32x256xf32>, vector<256x256xf32>, vector<32x256xf32> -> vector<32x256xf32>
    %c0_9 = arith.constant 0 : index
    %c0_10 = arith.constant 0 : index
    %14 = vector.load %arg6[%c0_9, %c0_10] : memref<1x256xf32, #tpu.memory_space<vmem>>, vector<1x256xf32>
    %15 = vector.broadcast %14 : vector<1x256xf32> to vector<32x256xf32>
    %16 = arith.addf %13, %15 : vector<32x256xf32>
    %17 = vector.extract_strided_slice %16 {offsets = [0, 0], sizes = [32, 128], strides = [1, 1]} : vector<32x256xf32> to vector<32x128xf32>
    %18 = vector.extract_strided_slice %16 {offsets = [0, 128], sizes = [32, 128], strides = [1, 1]} : vector<32x256xf32> to vector<32x128xf32>
    %c0_11 = arith.constant 0 : index
    %c0_12 = arith.constant 0 : index
    %19 = vector.load %arg1[%c0_11, %c0_12] : memref<32x128xf32, #tpu.memory_space<vmem>>, vector<32x128xf32>
    %cst_13 = arith.constant dense<0.000000e+00> : vector<32xf32>
    %20 = vector.multi_reduction <add>, %19, %cst_13 [1] : vector<32x128xf32> to vector<32xf32>
    %21 = vector.shape_cast %20 : vector<32xf32> to vector<32x1xf32>
    %cst_14 = arith.constant 1.280000e+02 : f32
    %22 = vector.broadcast %cst_14 : f32 to vector<32x1xf32>
    %23 = arith.divf %21, %22 : vector<32x1xf32>
    %24 = vector.broadcast %23 : vector<32x1xf32> to vector<32x128xf32>
    %25 = arith.subf %19, %24 : vector<32x128xf32>
    %26 = arith.mulf %25, %25 : vector<32x128xf32>
    %cst_15 = arith.constant dense<0.000000e+00> : vector<32xf32>
    %27 = vector.multi_reduction <add>, %26, %cst_15 [1] : vector<32x128xf32> to vector<32xf32>
    %28 = vector.shape_cast %27 : vector<32xf32> to vector<32x1xf32>
    %cst_16 = arith.constant 1.280000e+02 : f32
    %29 = vector.broadcast %cst_16 : f32 to vector<32x1xf32>
    %30 = arith.divf %28, %29 : vector<32x1xf32>
    %cst_17 = arith.constant 9.99999974E-6 : f32
    %31 = vector.broadcast %cst_17 : f32 to vector<32x1xf32>
    %32 = arith.addf %30, %31 : vector<32x1xf32>
    %33 = math.rsqrt %32 : vector<32x1xf32>
    %34 = vector.broadcast %33 : vector<32x1xf32> to vector<32x128xf32>
    %35 = arith.mulf %25, %34 : vector<32x128xf32>
    %36 = arith.mulf %35, %17 : vector<32x128xf32>
    %37 = arith.addf %36, %18 : vector<32x128xf32>
    %c0_18 = arith.constant 0 : index
    %c0_19 = arith.constant 0 : index
    %38 = vector.load %arg7[%c0_18, %c0_19] : memref<32x128xf32, #tpu.memory_space<vmem>>, vector<32x128xf32>
    tpu.vector_store %arg7[%c0_18, %c0_19], %37 {strides = array<i32>} : memref<32x128xf32, #tpu.memory_space<vmem>>, vector<32x128xf32>,
    return
  }
  func.func @transform_0(%arg0: i32) -> (i32, i32) {
    %c0_i32 = arith.constant 0 : i32
    %c0_i32_0 = arith.constant 0 : i32
    return %arg0, %c0_i32 : i32, i32
  }
  func.func @transform_1(%arg0: i32) -> (i32, i32) {
    %c0_i32 = arith.constant 0 : i32
    %c0_i32_0 = arith.constant 0 : i32
    return %arg0, %c0_i32 : i32, i32
  }
  func.func @transform_2(%arg0: i32) -> (i32, i32) {
    %c0_i32 = arith.constant 0 : i32
    %c0_i32_0 = arith.constant 0 : i32
    %c0_i32_1 = arith.constant 0 : i32
    return %c0_i32, %c0_i32_0 : i32, i32
  }
  func.func @transform_3(%arg0: i32) -> (i32, i32) {
    %c0_i32 = arith.constant 0 : i32
    %c0_i32_0 = arith.constant 0 : i32
    %c0_i32_1 = arith.constant 0 : i32
    return %c0_i32, %c0_i32_0 : i32, i32
  }
  func.func @transform_4(%arg0: i32) -> (i32, i32) {
    %c0_i32 = arith.constant 0 : i32
    %c0_i32_0 = arith.constant 0 : i32
    %c0_i32_1 = arith.constant 0 : i32
    return %c0_i32, %c0_i32_0 : i32, i32
  }
  func.func @transform_5(%arg0: i32) -> (i32, i32) {
    %c0_i32 = arith.constant 0 : i32
    %c0_i32_0 = arith.constant 0 : i32
    %c0_i32_1 = arith.constant 0 : i32
    return %c0_i32, %c0_i32_0 : i32, i32
  }
  func.func @transform_6(%arg0: i32) -> (i32, i32) {
    %c0_i32 = arith.constant 0 : i32
    %c0_i32_0 = arith.constant 0 : i32
    return %arg0, %c0_i32 : i32, i32
  }
}

</mosaic_0001>

<llo_original>
// kernel: tpu_custom_call.1
$region0: #{tpu_custom_call.1}
  #allocation0 [shape = 'u32[]', space=smem, size = 0x4, offset = 0x4, fixed_abs, tag = 'smem constant byte address 0x4 - core index']
  #allocation1 [shape = 'u32[144,128]{1,0:T(1,128)}', space=vmem, size = 0x12000, scoped, tag = 'internal scratch']
  %s0 = inlined_call_operand.hbm [shape: f32[32,128], index: 0, kind: input, shape index: {}]
  %s1 = inlined_call_operand.hbm [shape: f32[32,64], index: 1, kind: input, shape index: {}]
  %s2 = inlined_call_operand.hbm [shape: f32[64,256], index: 2, kind: input, shape index: {}]
  %s3 = inlined_call_operand.vmem [shape: f32[1,256], index: 3, kind: input, shape index: {}]
  %s4 = inlined_call_operand.hbm [shape: f32[256,256], index: 4, kind: input, shape index: {}]
  %s5 = inlined_call_operand.vmem [shape: f32[1,256], index: 5, kind: input, shape index: {}]
  %s6 = inlined_call_operand.hbm [shape: f32[32,128], index: 6, kind: output, shape index: {}]
  %s7 = sld [smem:[#allocation0]]
  $region50: #{tpu_custom_call.1} parent=0
    _
  %s9 = ssub.s32 1, %s7
  %s10 = scalar_select 0, %s9, %s7
  $region1: #{tpu_custom_call.1} parent=0
    #allocation2 [shape = 'u8[16384]{0}', space=vmem, size = 0x4000, scoped, tag = 'input window, operand 0, single buffered']
    #allocation3 [shape = 's32[1]{0}', space=sflag, size = 0x4, scoped, tag = 'scoped memory for tpu_custom_call.1']
    #allocation4 [shape = 's32[1]{0}', space=sflag, size = 0x4, scoped, tag = 'scoped memory for tpu_custom_call.1']
    #allocation5 [shape = 'u8[16384]{0}', space=vmem, size = 0x4000, scoped, tag = 'input window, operand 1, single buffered']
    #allocation6 [shape = 's32[1]{0}', space=sflag, size = 0x4, scoped, tag = 'scoped memory for tpu_custom_call.1']
    #allocation7 [shape = 'u8[65536]{0}', space=vmem, size = 0x10000, scoped, tag = 'input window, operand 2, single buffered']
    #allocation8 [shape = 'u8[262144]{0}', space=vmem, size = 0x40000, scoped, tag = 'input window, operand 4, single buffered']
    #allocation9 [shape = 's32[1]{0}', space=sflag, size = 0x4, scoped, tag = 'scoped memory for tpu_custom_call.1']
    #allocation10 [shape = 'u8[16384]{0}', space=vmem, size = 0x4000, scoped, tag = 'output window, operand 0, single buffered']
    %11 = vsyncpa [#allocation3], 0
    %12 = vsyncpa [#allocation6], 0
    %13 = vsyncpa [#allocation9], 0
    %14 = vsyncpa [#allocation4], 0
    // Predicated region
    $region2: #{tpu_custom_call.1} parent=1 // pred_check
      _
    $region3: #{tpu_custom_call.1} parent=1 // pred_check_branch
      %16 = sbr.rel (0) target = $region5
    $region4: #{tpu_custom_call.1} parent=1 // pred_region
      %s18 = ssub.s32 512, 512
      %19 = vsyncadd [#allocation3], %s18
      %s20 = sshll.u32 [#allocation2], 4
      %s21 = int_to_ptr.vmem [resolvable:$true] %s20
      %26 = dma.hbm_to_vmem [thread:$0]  %s0, 512, %s21, [#allocation3], 128, 128, 8
    $region5: #{tpu_custom_call.1} parent=1 // pred_fallthru
      _
    // Predicated region
    $region6: #{tpu_custom_call.1} parent=1 // pred_check
      _
    $region7: #{tpu_custom_call.1} parent=1 // pred_check_branch
      %28 = sbr.rel (0) target = $region9
    $region8: #{tpu_custom_call.1} parent=1 // pred_region
      %s30 = ssub.s32 512, 512
      %31 = vsyncadd [#allocation6], %s30
      %s32 = sshll.u32 [#allocation5], 4
      %s33 = int_to_ptr.vmem [resolvable:$true] %s32
      %38 = dma.hbm_to_vmem [thread:$0]  %s1, 512, %s33, [#allocation6], 128, 128, 8
    $region9: #{tpu_custom_call.1} parent=1 // pred_fallthru
      _
    // Predicated region
    $region10: #{tpu_custom_call.1} parent=1 // pred_check
      _
    $region11: #{tpu_custom_call.1} parent=1 // pred_check_branch
      %40 = sbr.rel (0) target = $region13
    $region12: #{tpu_custom_call.1} parent=1 // pred_region
      %s42 = ssub.s32 2048, 2048
      %43 = vsyncadd [#allocation6], %s42
      %s44 = sshll.u32 [#allocation7], 4
      %s45 = int_to_ptr.vmem [resolvable:$true] %s44
      %50 = dma.hbm_to_vmem [thread:$0]  %s2, 2048, %s45, [#allocation6], 256, 256, 16
    $region13: #{tpu_custom_call.1} parent=1 // pred_fallthru
      _
    // Predicated region
    $region14: #{tpu_custom_call.1} parent=1 // pred_check
      _
    $region15: #{tpu_custom_call.1} parent=1 // pred_check_branch
      %52 = sbr.rel (0) target = $region17
    $region16: #{tpu_custom_call.1} parent=1 // pred_region
      _
    $region17: #{tpu_custom_call.1} parent=1 // pred_fallthru
      _
    // Predicated region
    $region18: #{tpu_custom_call.1} parent=1 // pred_check
      _
    $region19: #{tpu_custom_call.1} parent=1 // pred_check_branch
      %54 = sbr.rel (0) target = $region21
    $region20: #{tpu_custom_call.1} parent=1 // pred_region
      %s56 = ssub.s32 8192, 8192
      %57 = vsyncadd [#allocation9], %s56
      %s58 = sshll.u32 [#allocation8], 4
      %s59 = int_to_ptr.vmem [resolvable:$true] %s58
      %64 = dma.hbm_to_vmem [thread:$0]  %s4, 8192, %s59, [#allocation9], 256, 256, 16
    $region21: #{tpu_custom_call.1} parent=1 // pred_fallthru
      _
    // Predicated region
    $region22: #{tpu_custom_call.1} parent=1 // pred_check
      _
    $region23: #{tpu_custom_call.1} parent=1 // pred_check_branch
      %66 = sbr.rel (0) target = $region25
    $region24: #{tpu_custom_call.1} parent=1 // pred_region
      _
    $region25: #{tpu_custom_call.1} parent=1 // pred_fallthru
      _
    // Predicated region
    $region26: #{tpu_custom_call.1} parent=1 // pred_check
      _
    $region27: #{tpu_custom_call.1} parent=1 // pred_check_branch
      %68 = sbr.rel (0) target = $region29
    $region28: #{tpu_custom_call.1} parent=1 // pred_region
      %69 = dma.done [#allocation3], 512
    $region29: #{tpu_custom_call.1} parent=1 // pred_fallthru
      _
    // Predicated region
    $region30: #{tpu_custom_call.1} parent=1 // pred_check
      _
    $region31: #{tpu_custom_call.1} parent=1 // pred_check_branch
      %71 = sbr.rel (0) target = $region33
    $region32: #{tpu_custom_call.1} parent=1 // pred_region
      %72 = dma.done [#allocation6], 512
    $region33: #{tpu_custom_call.1} parent=1 // pred_fallthru
      _
    // Predicated region
    $region34: #{tpu_custom_call.1} parent=1 // pred_check
      _
    $region35: #{tpu_custom_call.1} parent=1 // pred_check_branch
      %74 = sbr.rel (0) target = $region37
    $region36: #{tpu_custom_call.1} parent=1 // pred_region
      %75 = dma.done [#allocation6], 2048
    $region37: #{tpu_custom_call.1} parent=1 // pred_fallthru
      _
    // Predicated region
    $region38: #{tpu_custom_call.1} parent=1 // pred_check
      _
    $region39: #{tpu_custom_call.1} parent=1 // pred_check_branch
      %77 = sbr.rel (0) target = $region41
    $region40: #{tpu_custom_call.1} parent=1 // pred_region
      %78 = dma.done [#allocation9], 8192
    $region41: #{tpu_custom_call.1} parent=1 // pred_fallthru
      _
    %v79 = vld [vmem:[#allocation5] sm:$0xff]
    %v80 = vld [vmem:[#allocation5 + $0x8] sm:$0xff]
    %v81 = vld [vmem:[#allocation5 + $0x10] sm:$0xff]
    %v82 = vld [vmem:[#allocation5 + $0x18] sm:$0xff]
    %v83 = vld [vmem:[#allocation7] sm:$0xff]
    %v84 = vld [vmem:[#allocation7 + $0x8] sm:$0xff]
    %v85 = vld [vmem:[#allocation7 + $0x10] sm:$0xff]
    %v86 = vld [vmem:[#allocation7 + $0x18] sm:$0xff]
    %v87 = vld [vmem:[#allocation7 + $0x20] sm:$0xff]
    %v88 = vld [vmem:[#allocation7 + $0x28] sm:$0xff]
    %v89 = vld [vmem:[#allocation7 + $0x30] sm:$0xff]
    %v90 = vld [vmem:[#allocation7 + $0x38] sm:$0xff]
    %v91 = vld [vmem:[#allocation7 + $0x40] sm:$0xff]
    %v92 = vld [vmem:[#allocation7 + $0x48] sm:$0xff]
    %v93 = vld [vmem:[#allocation7 + $0x50] sm:$0xff]
    %v94 = vld [vmem:[#allocation7 + $0x58] sm:$0xff]
    %v95 = vld [vmem:[#allocation7 + $0x60] sm:$0xff]
    %v96 = vld [vmem:[#allocation7 + $0x68] sm:$0xff]
    %v97 = vld [vmem:[#allocation7 + $0x70] sm:$0xff]
    %v98 = vld [vmem:[#allocation7 + $0x78] sm:$0xff]
    %v99 = vld [vmem:[%s3] sm:$0x3]
    %v101 = vlaneseq
    %v102 = vshrl.u32 %v101, 7
    %v103 = vsub.s32 0, %v102
    %v104 = vrot.slane %v99, %v103
    %v105 = vlaneseq
    %v106 = vshrl.u32 %v105, 7
    %v107 = vsub.s32 1, %v106
    %v108 = vrot.slane %v99, %v107
    %vm111 = vcmask 523264
    %v113 = vsel %vm111, %v79, 0
    %v116 = vsel %vm111, %v80, 0
    %v119 = vsel %vm111, %v81, 0
    %v122 = vsel %vm111, %v82, 0
    %124 = vmatprep.subr.mxu0 %v84
    %125 = vmatpush1.msra.mxu0 %v83
    %126 = vmatprep.subr.mxu0 %v86
    %127 = vmatpush1.msra.mxu0 %v85
    %128 = vmatprep.subr.mxu0 %v88
    %129 = vmatpush1.msra.mxu0 %v87
    %130 = vmatprep.subr.mxu0 %v90
    %131 = vmatpush1.msra.mxu0 %v89
    %132 = vmatprep.subr.mxu0 %v92
    %133 = vmatpush1.msra.mxu0 %v91
    %134 = vmatprep.subr.mxu0 %v94
    %135 = vmatpush1.msra.mxu0 %v93
    %136 = vmatprep.subr.mxu0 %v96
    %137 = vmatpush1.msra.mxu0 %v95
    %138 = vmatprep.subr.mxu0 %v98
    %139 = vmatpush1.msra.mxu0 %v97
    %140 = vmatprep.subr.mxu0 0.0
    %141 = vmatpush1.msra.mxu0 0.0
    %142 = vmatprep.subr.mxu0 0.0
    %143 = vmatpush1.msra.mxu0 0.0
    %144 = vmatprep.subr.mxu0 0.0
    %145 = vmatpush1.msra.mxu0 0.0
    %146 = vmatprep.subr.mxu0 0.0
    %147 = vmatpush1.msra.mxu0 0.0
    %148 = vmatprep.subr.mxu0 0.0
    %149 = vmatpush1.msra.mxu0 0.0
    %150 = vmatprep.subr.mxu0 0.0
    %151 = vmatpush1.msra.mxu0 0.0
    %152 = vmatprep.subr.mxu0 0.0
    %153 = vmatpush1.msra.mxu0 0.0
    %154 = vmatprep.subr.mxu0 0.0
    %155 = vmatpush1.msra.mxu0 0.0
    %156 = vmatprep.subr.mxu0 0.0
    %157 = vmatpush1.msra.mxu0 0.0
    %158 = vmatprep.subr.mxu0 0.0
    %159 = vmatpush1.msra.mxu0 0.0
    %160 = vmatprep.subr.mxu0 0.0
    %161 = vmatpush1.msra.mxu0 0.0
    %162 = vmatprep.subr.mxu0 0.0
    %163 = vmatpush1.msra.mxu0 0.0
    %164 = vmatprep.subr.mxu0 0.0
    %165 = vmatpush1.msra.mxu0 0.0
    %166 = vmatprep.subr.mxu0 0.0
    %167 = vmatpush1.msra.mxu0 0.0
    %168 = vmatprep.subr.mxu0 0.0
    %169 = vmatpush1.msra.mxu0 0.0
    %170 = vmatprep.subr.mxu0 0.0
    %171 = vmatpush1.msra.mxu0 0.0
    %172 = vmatprep.subr.mxu0 0.0
    %173 = vmatpush1.msra.mxu0 0.0
    %174 = vmatprep.subr.mxu0 0.0
    %175 = vmatpush1.msra.mxu0 0.0
    %176 = vmatprep.subr.mxu0 0.0
    %177 = vmatpush1.msra.mxu0 0.0
    %178 = vmatprep.subr.mxu0 0.0
    %179 = vmatpush1.msra.mxu0 0.0
    %180 = vmatprep.subr.mxu0 0.0
    %181 = vmatpush1.msra.mxu0 0.0
    %182 = vmatprep.subr.mxu0 0.0
    %183 = vmatpush1.msra.mxu0 0.0
    %184 = vmatprep.subr.mxu0 0.0
    %185 = vmatpush1.msra.mxu0 0.0
    %186 = vmatprep.subr.mxu0 0.0
    %187 = vmatpush1.msra.mxu0 0.0
    %188 = vmatprep.mubr.f32.mxu0 0.0
    %189 = vmatmul.mubr.f32.gmra.mrb[0].mxu0 %v113
    %v190 = vpop.f32.mrb[0].mxu0
    %v191 = vadd.f32 %v104, %v190
    %v192 = vpop.f32.mrb[0].mxu0
    %v193 = vadd.f32 %v108, %v192
    %194 = vmatprep.mubr.f32.mxu0 0.0
    %195 = vmatmul.mubr.f32.gmra.mrb[0].mxu0 %v116
    %v196 = vpop.f32.mrb[0].mxu0
    %v197 = vadd.f32 %v104, %v196
    %v198 = vpop.f32.mrb[0].mxu0
    %v199 = vadd.f32 %v108, %v198
    %200 = vmatprep.mubr.f32.mxu0 0.0
    %201 = vmatmul.mubr.f32.gmra.mrb[0].mxu0 %v119
    %v202 = vpop.f32.mrb[0].mxu0
    %v203 = vadd.f32 %v104, %v202
    %v204 = vpop.f32.mrb[0].mxu0
    %v205 = vadd.f32 %v108, %v204
    %206 = vmatprep.mubr.f32.mxu0 0.0
    %207 = vmatmul.mubr.f32.gmra.mrb[0].mxu0 %v122
    %v208 = vpop.f32.mrb[0].mxu0
    %v209 = vadd.f32 %v104, %v208
    %v210 = vpop.f32.mrb[0].mxu0
    %v211 = vadd.f32 %v108, %v210
    %212 = vdwg.mxu0
    %v213 = vxor.u32 %v191, 2147483648
    %v214 = vxor.u32 %v193, 2147483648
    %v215 = vxor.u32 %v197, 2147483648
    %v216 = vxor.u32 %v199, 2147483648
    %v217 = vxor.u32 %v203, 2147483648
    %v218 = vxor.u32 %v205, 2147483648
    %v219 = vxor.u32 %v209, 2147483648
    %v220 = vxor.u32 %v211, 2147483648
    %v221 = vmul.f32 %v213, 1.442695
    %v222 = vpow.pop %v221
    %v223 = vmul.f32 %v214, 1.442695
    %v224 = vpow.pop %v223
    %v225 = vmul.f32 %v215, 1.442695
    %v226 = vpow.pop %v225
    %v227 = vmul.f32 %v216, 1.442695
    %v228 = vpow.pop %v227
    %v229 = vmul.f32 %v217, 1.442695
    %v230 = vpow.pop %v229
    %v231 = vmul.f32 %v218, 1.442695
    %v232 = vpow.pop %v231
    %v233 = vmul.f32 %v219, 1.442695
    %v234 = vpow.pop %v233
    %v235 = vmul.f32 %v220, 1.442695
    %v236 = vpow.pop %v235
    %v237 = vadd.f32 %v222, 1.0
    %v238 = vadd.f32 %v224, 1.0
    %v239 = vadd.f32 %v226, 1.0
    %v240 = vadd.f32 %v228, 1.0
    %v241 = vadd.f32 %v230, 1.0
    %v242 = vadd.f32 %v232, 1.0
    %v243 = vadd.f32 %v234, 1.0
    %v244 = vadd.f32 %v236, 1.0
    %v245 = vrcp.pop %v237
    %v246 = vmul.f32 1.0, %v245
    %v247 = vrcp.pop %v238
    %v248 = vmul.f32 1.0, %v247
    %v249 = vrcp.pop %v239
    %v250 = vmul.f32 1.0, %v249
    %v251 = vrcp.pop %v240
    %v252 = vmul.f32 1.0, %v251
    %v253 = vrcp.pop %v241
    %v254 = vmul.f32 1.0, %v253
    %v255 = vrcp.pop %v242
    %v256 = vmul.f32 1.0, %v255
    %v257 = vrcp.pop %v243
    %v258 = vmul.f32 1.0, %v257
    %v259 = vrcp.pop %v244
    %v260 = vmul.f32 1.0, %v259
    %v261 = vmul.f32 %v191, %v246
    %v262 = vmul.f32 %v193, %v248
    %v263 = vmul.f32 %v197, %v250
    %v264 = vmul.f32 %v199, %v252
    %v265 = vmul.f32 %v203, %v254
    %v266 = vmul.f32 %v205, %v256
    %v267 = vmul.f32 %v209, %v258
    %v268 = vmul.f32 %v211, %v260
    %v269 = vld [vmem:[#allocation8] sm:$0xff]
    %v270 = vld [vmem:[#allocation8 + $0x8] sm:$0xff]
    %v271 = vld [vmem:[#allocation8 + $0x10] sm:$0xff]
    %v272 = vld [vmem:[#allocation8 + $0x18] sm:$0xff]
    %v273 = vld [vmem:[#allocation8 + $0x20] sm:$0xff]
    %v274 = vld [vmem:[#allocation8 + $0x28] sm:$0xff]
    %v275 = vld [vmem:[#allocation8 + $0x30] sm:$0xff]
    %v276 = vld [vmem:[#allocation8 + $0x38] sm:$0xff]
    %v277 = vld [vmem:[#allocation8 + $0x40] sm:$0xff]
    %v278 = vld [vmem:[#allocation8 + $0x48] sm:$0xff]
    %v279 = vld [vmem:[#allocation8 + $0x50] sm:$0xff]
    %v280 = vld [vmem:[#allocation8 + $0x58] sm:$0xff]
    %v281 = vld [vmem:[#allocation8 + $0x60] sm:$0xff]
    %v282 = vld [vmem:[#allocation8 + $0x68] sm:$0xff]
    %v283 = vld [vmem:[#allocation8 + $0x70] sm:$0xff]
    %v284 = vld [vmem:[#allocation8 + $0x78] sm:$0xff]
    %v285 = vld [vmem:[#allocation8 + $0x80] sm:$0xff]
    %v286 = vld [vmem:[#allocation8 + $0x88] sm:$0xff]
    %v287 = vld [vmem:[#allocation8 + $0x90] sm:$0xff]
    %v288 = vld [vmem:[#allocation8 + $0x98] sm:$0xff]
    %v289 = vld [vmem:[#allocation8 + $0xa0] sm:$0xff]
    %v290 = vld [vmem:[#allocation8 + $0xa8] sm:$0xff]
    %v291 = vld [vmem:[#allocation8 + $0xb0] sm:$0xff]
    %v292 = vld [vmem:[#allocation8 + $0xb8] sm:$0xff]
    %v293 = vld [vmem:[#allocation8 + $0xc0] sm:$0xff]
    %v294 = vld [vmem:[#allocation8 + $0xc8] sm:$0xff]
    %v295 = vld [vmem:[#allocation8 + $0xd0] sm:$0xff]
    %v296 = vld [vmem:[#allocation8 + $0xd8] sm:$0xff]
    %v297 = vld [vmem:[#allocation8 + $0xe0] sm:$0xff]
    %v298 = vld [vmem:[#allocation8 + $0xe8] sm:$0xff]
    %v299 = vld [vmem:[#allocation8 + $0xf0] sm:$0xff]
    %v300 = vld [vmem:[#allocation8 + $0xf8] sm:$0xff]
    %v301 = vld [vmem:[#allocation8 + $0x100] sm:$0xff]
    %v302 = vld [vmem:[#allocation8 + $0x108] sm:$0xff]
    %v303 = vld [vmem:[#allocation8 + $0x110] sm:$0xff]
    %v304 = vld [vmem:[#allocation8 + $0x118] sm:$0xff]
    %v305 = vld [vmem:[#allocation8 + $0x120] sm:$0xff]
    %v306 = vld [vmem:[#allocation8 + $0x128] sm:$0xff]
    %v307 = vld [vmem:[#allocation8 + $0x130] sm:$0xff]
    %v308 = vld [vmem:[#allocation8 + $0x138] sm:$0xff]
    %v309 = vld [vmem:[#allocation8 + $0x140] sm:$0xff]
    %v310 = vld [vmem:[#allocation8 + $0x148] sm:$0xff]
    %v311 = vld [vmem:[#allocation8 + $0x150] sm:$0xff]
    %v312 = vld [vmem:[#allocation8 + $0x158] sm:$0xff]
    %v313 = vld [vmem:[#allocation8 + $0x160] sm:$0xff]
    %v314 = vld [vmem:[#allocation8 + $0x168] sm:$0xff]
    %v315 = vld [vmem:[#allocation8 + $0x170] sm:$0xff]
    %v316 = vld [vmem:[#allocation8 + $0x178] sm:$0xff]
    %v317 = vld [vmem:[#allocation8 + $0x180] sm:$0xff]
    %v318 = vld [vmem:[#allocation8 + $0x188] sm:$0xff]
    %v319 = vld [vmem:[#allocation8 + $0x190] sm:$0xff]
    %v320 = vld [vmem:[#allocation8 + $0x198] sm:$0xff]
    %v321 = vld [vmem:[#allocation8 + $0x1a0] sm:$0xff]
    %v322 = vld [vmem:[#allocation8 + $0x1a8] sm:$0xff]
    %v323 = vld [vmem:[#allocation8 + $0x1b0] sm:$0xff]
    %v324 = vld [vmem:[#allocation8 + $0x1b8] sm:$0xff]
    %v325 = vld [vmem:[#allocation8 + $0x1c0] sm:$0xff]
    %v326 = vld [vmem:[#allocation8 + $0x1c8] sm:$0xff]
    %v327 = vld [vmem:[#allocation8 + $0x1d0] sm:$0xff]
    %v328 = vld [vmem:[#allocation8 + $0x1d8] sm:$0xff]
    %v329 = vld [vmem:[#allocation8 + $0x1e0] sm:$0xff]
    %v330 = vld [vmem:[#allocation8 + $0x1e8] sm:$0xff]
    %v331 = vld [vmem:[#allocation8 + $0x1f0] sm:$0xff]
    %v332 = vld [vmem:[#allocation8 + $0x1f8] sm:$0xff]
    %v333 = vld [vmem:[%s5] sm:$0x3]
    %v335 = vlaneseq
    %v336 = vshrl.u32 %v335, 7
    %v337 = vsub.s32 0, %v336
    %v338 = vrot.slane %v333, %v337
    %v339 = vlaneseq
    %v340 = vshrl.u32 %v339, 7
    %v341 = vsub.s32 1, %v340
    %v342 = vrot.slane %v333, %v341
    %345 = vmatprep.subr.mxu0 %v270
    %346 = vmatpush1.msra.mxu0 %v269
    %347 = vmatprep.subr.mxu0 %v272
    %348 = vmatpush1.msra.mxu0 %v271
    %349 = vmatprep.subr.mxu0 %v274
    %350 = vmatpush1.msra.mxu0 %v273
    %351 = vmatprep.subr.mxu0 %v276
    %352 = vmatpush1.msra.mxu0 %v275
    %353 = vmatprep.subr.mxu0 %v278
    %354 = vmatpush1.msra.mxu0 %v277
    %355 = vmatprep.subr.mxu0 %v280
    %356 = vmatpush1.msra.mxu0 %v279
    %357 = vmatprep.subr.mxu0 %v282
    %358 = vmatpush1.msra.mxu0 %v281
    %359 = vmatprep.subr.mxu0 %v284
    %360 = vmatpush1.msra.mxu0 %v283
    %361 = vmatprep.subr.mxu0 %v286
    %362 = vmatpush1.msra.mxu0 %v285
    %363 = vmatprep.subr.mxu0 %v288
    %364 = vmatpush1.msra.mxu0 %v287
    %365 = vmatprep.subr.mxu0 %v290
    %366 = vmatpush1.msra.mxu0 %v289
    %367 = vmatprep.subr.mxu0 %v292
    %368 = vmatpush1.msra.mxu0 %v291
    %369 = vmatprep.subr.mxu0 %v294
    %370 = vmatpush1.msra.mxu0 %v293
    %371 = vmatprep.subr.mxu0 %v296
    %372 = vmatpush1.msra.mxu0 %v295
    %373 = vmatprep.subr.mxu0 %v298
    %374 = vmatpush1.msra.mxu0 %v297
    %375 = vmatprep.subr.mxu0 %v300
    %376 = vmatpush1.msra.mxu0 %v299
    %377 = vmatprep.subr.mxu0 %v302
    %378 = vmatpush1.msra.mxu0 %v301
    %379 = vmatprep.subr.mxu0 %v304
    %380 = vmatpush1.msra.mxu0 %v303
    %381 = vmatprep.subr.mxu0 %v306
    %382 = vmatpush1.msra.mxu0 %v305
    %383 = vmatprep.subr.mxu0 %v308
    %384 = vmatpush1.msra.mxu0 %v307
    %385 = vmatprep.subr.mxu0 %v310
    %386 = vmatpush1.msra.mxu0 %v309
    %387 = vmatprep.subr.mxu0 %v312
    %388 = vmatpush1.msra.mxu0 %v311
    %389 = vmatprep.subr.mxu0 %v314
    %390 = vmatpush1.msra.mxu0 %v313
    %391 = vmatprep.subr.mxu0 %v316
    %392 = vmatpush1.msra.mxu0 %v315
    %393 = vmatprep.subr.mxu0 %v318
    %394 = vmatpush1.msra.mxu0 %v317
    %395 = vmatprep.subr.mxu0 %v320
    %396 = vmatpush1.msra.mxu0 %v319
    %397 = vmatprep.subr.mxu0 %v322
    %398 = vmatpush1.msra.mxu0 %v321
    %399 = vmatprep.subr.mxu0 %v324
    %400 = vmatpush1.msra.mxu0 %v323
    %401 = vmatprep.subr.mxu0 %v326
    %402 = vmatpush1.msra.mxu0 %v325
    %403 = vmatprep.subr.mxu0 %v328
    %404 = vmatpush1.msra.mxu0 %v327
    %405 = vmatprep.subr.mxu0 %v330
    %406 = vmatpush1.msra.mxu0 %v329
    %407 = vmatprep.subr.mxu0 %v332
    %408 = vmatpush1.msra.mxu0 %v331
    %409 = vmatprep.mubr.f32.mxu0 %v262
    %410 = vmatmul.mubr.f32.gmra.mrb[0].mxu0 %v261
    %v411 = vpop.f32.mrb[0].mxu0
    %v412 = vadd.f32 %v338, %v411
    %v413 = vpop.f32.mrb[0].mxu0
    %v414 = vadd.f32 %v342, %v413
    %415 = vmatprep.mubr.f32.mxu0 %v264
    %416 = vmatmul.mubr.f32.gmra.mrb[0].mxu0 %v263
    %v417 = vpop.f32.mrb[0].mxu0
    %v418 = vadd.f32 %v338, %v417
    %v419 = vpop.f32.mrb[0].mxu0
    %v420 = vadd.f32 %v342, %v419
    %421 = vmatprep.mubr.f32.mxu0 %v266
    %422 = vmatmul.mubr.f32.gmra.mrb[0].mxu0 %v265
    %v423 = vpop.f32.mrb[0].mxu0
    %v424 = vadd.f32 %v338, %v423
    %v425 = vpop.f32.mrb[0].mxu0
    %v426 = vadd.f32 %v342, %v425
    %427 = vmatprep.mubr.f32.mxu0 %v268
    %428 = vmatmul.mubr.f32.gmra.mrb[0].mxu0 %v267
    %v429 = vpop.f32.mrb[0].mxu0
    %v430 = vadd.f32 %v338, %v429
    %v431 = vpop.f32.mrb[0].mxu0
    %v432 = vadd.f32 %v342, %v431
    %433 = vdwg.mxu0
    %v434 = vld [vmem:[#allocation2] sm:$0xff]
    %v435 = vld [vmem:[#allocation2 + $0x8] sm:$0xff]
    %v436 = vld [vmem:[#allocation2 + $0x10] sm:$0xff]
    %v437 = vld [vmem:[#allocation2 + $0x18] sm:$0xff]
    %438 = vadd.xlane.f32.xlu0 %v434
    %v439 = vpop.xlane.xlu0 %438
    %440 = vadd.xlane.f32.xlu0 %v435
    %v441 = vpop.xlane.xlu0 %440
    %442 = vadd.xlane.f32.xlu0 %v436
    %v443 = vpop.xlane.xlu0 %442
    %444 = vadd.xlane.f32.xlu0 %v437
    %v445 = vpop.xlane.xlu0 %444
    %v446 = vrcp.pop 128.0
    %v447 = vmul.f32 %v439, %v446
    %v448 = vmul.f32 %v441, %v446
    %v449 = vmul.f32 %v443, %v446
    %v450 = vmul.f32 %v445, %v446
    %v451 = vsub.f32 %v434, %v447
    %v452 = vsub.f32 %v435, %v448
    %v453 = vsub.f32 %v436, %v449
    %v454 = vsub.f32 %v437, %v450
    %v455 = vmul.f32 %v451, %v451
    %v456 = vmul.f32 %v452, %v452
    %v457 = vmul.f32 %v453, %v453
    %v458 = vmul.f32 %v454, %v454
    %459 = vadd.xlane.f32.xlu0 %v455
    %v460 = vpop.xlane.xlu0 %459
    %461 = vadd.xlane.f32.xlu0 %v456
    %v462 = vpop.xlane.xlu0 %461
    %463 = vadd.xlane.f32.xlu0 %v457
    %v464 = vpop.xlane.xlu0 %463
    %465 = vadd.xlane.f32.xlu0 %v458
    %v466 = vpop.xlane.xlu0 %465
    %v467 = vmul.f32 %v460, %v446
    %v468 = vmul.f32 %v462, %v446
    %v469 = vmul.f32 %v464, %v446
    %v470 = vmul.f32 %v466, %v446
    %v471 = vadd.f32 %v467, 1e-05
    %v472 = vadd.f32 %v468, 1e-05
    %v473 = vadd.f32 %v469, 1e-05
    %v474 = vadd.f32 %v470, 1e-05
    %v475 = vrsqrt.pop %v471
    %v476 = vrsqrt.pop %v472
    %v477 = vrsqrt.pop %v473
    %v478 = vrsqrt.pop %v474
    %v479 = vmul.f32 %v451, %v475
    %v480 = vmul.f32 %v452, %v476
    %v481 = vmul.f32 %v453, %v477
    %v482 = vmul.f32 %v454, %v478
    %v483 = vmul.f32 %v479, %v412
    %v484 = vmul.f32 %v480, %v418
    %v485 = vmul.f32 %v481, %v424
    %v486 = vmul.f32 %v482, %v430
    %v487 = vadd.f32 %v483, %v414
    %v488 = vadd.f32 %v484, %v420
    %v489 = vadd.f32 %v485, %v426
    %v490 = vadd.f32 %v486, %v432
    %491 = vst [vmem:[#allocation10] sm:$0xff] %v487
    %492 = vst [vmem:[#allocation10 + $0x8] sm:$0xff] %v488
    %493 = vst [vmem:[#allocation10 + $0x10] sm:$0xff] %v489
    %494 = vst [vmem:[#allocation10 + $0x18] sm:$0xff] %v490
    // Predicated region
    $region42: #{tpu_custom_call.1} parent=1 // pred_check
      _
    $region43: #{tpu_custom_call.1} parent=1 // pred_check_branch
      %496 = sbr.rel (0) target = $region45
    $region44: #{tpu_custom_call.1} parent=1 // pred_region
      %s498 = ssub.s32 512, 512
      %499 = vsyncadd [#allocation4], %s498
      %s500 = sshll.u32 [#allocation10], 4
      %s501 = int_to_ptr.vmem [resolvable:$true] %s500
      %506 = dma.vmem_to_hbm [thread:$0]  %s501, 512, %s6, [#allocation4], 128, 128, 8
    $region45: #{tpu_custom_call.1} parent=1 // pred_fallthru
      _
    // Predicated region
    $region46: #{tpu_custom_call.1} parent=1 // pred_check
      _
    $region47: #{tpu_custom_call.1} parent=1 // pred_check_branch
      %508 = sbr.rel (0) target = $region49
    $region48: #{tpu_custom_call.1} parent=1 // pred_region
      %509 = dma.done [#allocation4], 512
    $region49: #{tpu_custom_call.1} parent=1 // pred_fallthru
      _
    %510 = vsyncpa [#allocation3], 1
    %511 = vsyncpa [#allocation6], 1
    %512 = vsyncpa [#allocation9], 1
    %513 = vsyncpa [#allocation4], 1

// kernel: tpu_custom_call.1
$region0: #{tpu_custom_call.1}
  #allocation0 [shape = 'u32[]', space=smem, size = 0x4, offset = 0x4, fixed_abs, tag = 'smem constant byte address 0x4 - core index']
  #allocation1 [shape = 'u32[144,128]{1,0:T(1,128)}', space=vmem, size = 0x12000, scoped, tag = 'internal scratch']
  %s0 = inlined_call_operand.hbm [shape: f32[32,128], index: 0, kind: input, shape index: {}]
  %s1 = inlined_call_operand.hbm [shape: f32[32,64], index: 1, kind: input, shape index: {}]
  %s2 = inlined_call_operand.hbm [shape: f32[64,256], index: 2, kind: input, shape index: {}]
  %s3 = inlined_call_operand.vmem [shape: f32[1,256], index: 3, kind: input, shape index: {}]
  %s4 = inlined_call_operand.hbm [shape: f32[256,256], index: 4, kind: input, shape index: {}]
  %s5 = inlined_call_operand.vmem [shape: f32[1,256], index: 5, kind: input, shape index: {}]
  %s6 = inlined_call_operand.hbm [shape: f32[32,128], index: 6, kind: output, shape index: {}]
  %s7 = sld [smem:[#allocation0]]
  $region50: #{tpu_custom_call.1} parent=0
    _
  %s9 = ssub.s32 1, %s7
  %s10 = scalar_select 0, %s9, %s7
  $region1: #{tpu_custom_call.1} parent=0
    #allocation2 [shape = 'u8[16384]{0}', space=vmem, size = 0x4000, scoped, tag = 'input window, operand 0, single buffered']
    #allocation3 [shape = 's32[1]{0}', space=sflag, size = 0x4, scoped, tag = 'scoped memory for tpu_custom_call.1']
    #allocation4 [shape = 's32[1]{0}', space=sflag, size = 0x4, scoped, tag = 'scoped memory for tpu_custom_call.1']
    #allocation5 [shape = 'u8[16384]{0}', space=vmem, size = 0x4000, scoped, tag = 'input window, operand 1, single buffered']
    #allocation6 [shape = 's32[1]{0}', space=sflag, size = 0x4, scoped, tag = 'scoped memory for tpu_custom_call.1']
    #allocation7 [shape = 'u8[65536]{0}', space=vmem, size = 0x10000, scoped, tag = 'input window, operand 2, single buffered']
    #allocation8 [shape = 'u8[262144]{0}', space=vmem, size = 0x40000, scoped, tag = 'input window, operand 4, single buffered']
    #allocation9 [shape = 's32[1]{0}', space=sflag, size = 0x4, scoped, tag = 'scoped memory for tpu_custom_call.1']
    #allocation10 [shape = 'u8[16384]{0}', space=vmem, size = 0x4000, scoped, tag = 'output window, operand 0, single buffered']
    %11 = vsyncpa [#allocation3], 0
    %12 = vsyncpa [#allocation6], 0
    %13 = vsyncpa [#allocation9], 0
    %14 = vsyncpa [#allocation4], 0
    // Predicated region
    $region2: #{tpu_custom_call.1} parent=1 // pred_check
      _
    $region3: #{tpu_custom_call.1} parent=1 // pred_check_branch
      %16 = sbr.rel (0) target = $region5
    $region4: #{tpu_custom_call.1} parent=1 // pred_region
      %s18 = ssub.s32 512, 512
      %19 = vsyncadd [#allocation3], %s18
      %s20 = sshll.u32 [#allocation2], 4
      %s21 = int_to_ptr.vmem [resolvable:$true] %s20
      %26 = dma.hbm_to_vmem [thread:$0]  %s0, 512, %s21, [#allocation3], 128, 128, 8
    $region5: #{tpu_custom_call.1} parent=1 // pred_fallthru
      _
    // Predicated region
    $region6: #{tpu_custom_call.1} parent=1 // pred_check
      _
    $region7: #{tpu_custom_call.1} parent=1 // pred_check_branch
      %28 = sbr.rel (0) target = $region9
    $region8: #{tpu_custom_call.1} parent=1 // pred_region
      %s30 = ssub.s32 512, 512
      %31 = vsyncadd [#allocation6], %s30
      %s32 = sshll.u32 [#allocation5], 4
      %s33 = int_to_ptr.vmem [resolvable:$true] %s32
      %38 = dma.hbm_to_vmem [thread:$0]  %s1, 512, %s33, [#allocation6], 128, 128, 8
    $region9: #{tpu_custom_call.1} parent=1 // pred_fallthru
      _
    // Predicated region
    $region10: #{tpu_custom_call.1} parent=1 // pred_check
      _
    $region11: #{tpu_custom_call.1} parent=1 // pred_check_branch
      %40 = sbr.rel (0) target = $region13
    $region12: #{tpu_custom_call.1} parent=1 // pred_region
      %s42 = ssub.s32 2048, 2048
      %43 = vsyncadd [#allocation6], %s42
      %s44 = sshll.u32 [#allocation7], 4
      %s45 = int_to_ptr.vmem [resolvable:$true] %s44
      %50 = dma.hbm_to_vmem [thread:$0]  %s2, 2048, %s45, [#allocation6], 256, 256, 16
    $region13: #{tpu_custom_call.1} parent=1 // pred_fallthru
      _
    // Predicated region
    $region14: #{tpu_custom_call.1} parent=1 // pred_check
      _
    $region15: #{tpu_custom_call.1} parent=1 // pred_check_branch
      %52 = sbr.rel (0) target = $region17
    $region16: #{tpu_custom_call.1} parent=1 // pred_region
      _
    $region17: #{tpu_custom_call.1} parent=1 // pred_fallthru
      _
    // Predicated region
    $region18: #{tpu_custom_call.1} parent=1 // pred_check
      _
    $region19: #{tpu_custom_call.1} parent=1 // pred_check_branch
      %54 = sbr.rel (0) target = $region21
    $region20: #{tpu_custom_call.1} parent=1 // pred_region
      %s56 = ssub.s32 8192, 8192
      %57 = vsyncadd [#allocation9], %s56
      %s58 = sshll.u32 [#allocation8], 4
      %s59 = int_to_ptr.vmem [resolvable:$true] %s58
      %64 = dma.hbm_to_vmem [thread:$0]  %s4, 8192, %s59, [#allocation9], 256, 256, 16
    $region21: #{tpu_custom_call.1} parent=1 // pred_fallthru
      _
    // Predicated region
    $region22: #{tpu_custom_call.1} parent=1 // pred_check
      _
    $region23: #{tpu_custom_call.1} parent=1 // pred_check_branch
      %66 = sbr.rel (0) target = $region25
    $region24: #{tpu_custom_call.1} parent=1 // pred_region
      _
    $region25: #{tpu_custom_call.1} parent=1 // pred_fallthru
      _
    // Predicated region
    $region26: #{tpu_custom_call.1} parent=1 // pred_check
      _
    $region27: #{tpu_custom_call.1} parent=1 // pred_check_branch
      %68 = sbr.rel (0) target = $region29
    $region28: #{tpu_custom_call.1} parent=1 // pred_region
      %69 = dma.done [#allocation3], 512
    $region29: #{tpu_custom_call.1} parent=1 // pred_fallthru
      _
    // Predicated region
    $region30: #{tpu_custom_call.1} parent=1 // pred_check
      _
    $region31: #{tpu_custom_call.1} parent=1 // pred_check_branch
      %71 = sbr.rel (0) target = $region33
    $region32: #{tpu_custom_call.1} parent=1 // pred_region
      %72 = dma.done [#allocation6], 512
    $region33: #{tpu_custom_call.1} parent=1 // pred_fallthru
      _
    // Predicated region
    $region34: #{tpu_custom_call.1} parent=1 // pred_check
      _
    $region35: #{tpu_custom_call.1} parent=1 // pred_check_branch
      %74 = sbr.rel (0) target = $region37
    $region36: #{tpu_custom_call.1} parent=1 // pred_region
      %75 = dma.done [#allocation6], 2048
    $region37: #{tpu_custom_call.1} parent=1 // pred_fallthru
      _
    // Predicated region
    $region38: #{tpu_custom_call.1} parent=1 // pred_check
      _
    $region39: #{tpu_custom_call.1} parent=1 // pred_check_branch
      %77 = sbr.rel (0) target = $region41
    $region40: #{tpu_custom_call.1} parent=1 // pred_region
      %78 = dma.done [#allocation9], 8192
    $region41: #{tpu_custom_call.1} parent=1 // pred_fallthru
      _
    %v79 = vld [vmem:[#allocation5] sm:$0xff]
    %v80 = vld [vmem:[#allocation5 + $0x8] sm:$0xff]
    %v81 = vld [vmem:[#allocation5 + $0x10] sm:$0xff]
    %v82 = vld [vmem:[#allocation5 + $0x18] sm:$0xff]
    %v83 = vld [vmem:[#allocation7] sm:$0xff]
    %v84 = vld [vmem:[#allocation7 + $0x8] sm:$0xff]
    %v85 = vld [vmem:[#allocation7 + $0x10] sm:$0xff]
    %v86 = vld [vmem:[#allocation7 + $0x18] sm:$0xff]
    %v87 = vld [vmem:[#allocation7 + $0x20] sm:$0xff]
    %v88 = vld [vmem:[#allocation7 + $0x28] sm:$0xff]
    %v89 = vld [vmem:[#allocation7 + $0x30] sm:$0xff]
    %v90 = vld [vmem:[#allocation7 + $0x38] sm:$0xff]
    %v91 = vld [vmem:[#allocation7 + $0x40] sm:$0xff]
    %v92 = vld [vmem:[#allocation7 + $0x48] sm:$0xff]
    %v93 = vld [vmem:[#allocation7 + $0x50] sm:$0xff]
    %v94 = vld [vmem:[#allocation7 + $0x58] sm:$0xff]
    %v95 = vld [vmem:[#allocation7 + $0x60] sm:$0xff]
    %v96 = vld [vmem:[#allocation7 + $0x68] sm:$0xff]
    %v97 = vld [vmem:[#allocation7 + $0x70] sm:$0xff]
    %v98 = vld [vmem:[#allocation7 + $0x78] sm:$0xff]
    %v99 = vld [vmem:[%s3] sm:$0x3]
    %v101 = vlaneseq
    %v102 = vshrl.u32 %v101, 7
    %v103 = vsub.s32 0, %v102
    %v104 = vrot.slane %v99, %v103
    %v105 = vlaneseq
    %v106 = vshrl.u32 %v105, 7
    %v107 = vsub.s32 1, %v106
    %v108 = vrot.slane %v99, %v107
    %vm111 = vcmask 523264
    %v113 = vsel %vm111, %v79, 0
    %v116 = vsel %vm111, %v80, 0
    %v119 = vsel %vm111, %v81, 0
    %v122 = vsel %vm111, %v82, 0
    %124 = vmatprep.subr.mxu0 %v84
    %125 = vmatpush1.msra.mxu0 %v83
    %126 = vmatprep.subr.mxu0 %v86
    %127 = vmatpush1.msra.mxu0 %v85
    %128 = vmatprep.subr.mxu0 %v88
    %129 = vmatpush1.msra.mxu0 %v87
    %130 = vmatprep.subr.mxu0 %v90
    %131 = vmatpush1.msra.mxu0 %v89
    %132 = vmatprep.subr.mxu0 %v92
    %133 = vmatpush1.msra.mxu0 %v91
    %134 = vmatprep.subr.mxu0 %v94
    %135 = vmatpush1.msra.mxu0 %v93
    %136 = vmatprep.subr.mxu0 %v96
    %137 = vmatpush1.msra.mxu0 %v95
    %138 = vmatprep.subr.mxu0 %v98
    %139 = vmatpush1.msra.mxu0 %v97
    %140 = vmatprep.subr.mxu0 0.0
    %141 = vmatpush1.msra.mxu0 0.0
    %142 = vmatprep.subr.mxu0 0.0
    %143 = vmatpush1.msra.mxu0 0.0
    %144 = vmatprep.subr.mxu0 0.0
    %145 = vmatpush1.msra.mxu0 0.0
    %146 = vmatprep.subr.mxu0 0.0
    %147 = vmatpush1.msra.mxu0 0.0
    %148 = vmatprep.subr.mxu0 0.0
    %149 = vmatpush1.msra.mxu0 0.0
    %150 = vmatprep.subr.mxu0 0.0
    %151 = vmatpush1.msra.mxu0 0.0
    %152 = vmatprep.subr.mxu0 0.0
    %153 = vmatpush1.msra.mxu0 0.0
    %154 = vmatprep.subr.mxu0 0.0
    %155 = vmatpush1.msra.mxu0 0.0
    %156 = vmatprep.subr.mxu0 0.0
    %157 = vmatpush1.msra.mxu0 0.0
    %158 = vmatprep.subr.mxu0 0.0
    %159 = vmatpush1.msra.mxu0 0.0
    %160 = vmatprep.subr.mxu0 0.0
    %161 = vmatpush1.msra.mxu0 0.0
    %162 = vmatprep.subr.mxu0 0.0
    %163 = vmatpush1.msra.mxu0 0.0
    %164 = vmatprep.subr.mxu0 0.0
    %165 = vmatpush1.msra.mxu0 0.0
    %166 = vmatprep.subr.mxu0 0.0
    %167 = vmatpush1.msra.mxu0 0.0
    %168 = vmatprep.subr.mxu0 0.0
    %169 = vmatpush1.msra.mxu0 0.0
    %170 = vmatprep.subr.mxu0 0.0
    %171 = vmatpush1.msra.mxu0 0.0
    %172 = vmatprep.subr.mxu0 0.0
    %173 = vmatpush1.msra.mxu0 0.0
    %174 = vmatprep.subr.mxu0 0.0
    %175 = vmatpush1.msra.mxu0 0.0
    %176 = vmatprep.subr.mxu0 0.0
    %177 = vmatpush1.msra.mxu0 0.0
    %178 = vmatprep.subr.mxu0 0.0
    %179 = vmatpush1.msra.mxu0 0.0
    %180 = vmatprep.subr.mxu0 0.0
    %181 = vmatpush1.msra.mxu0 0.0
    %182 = vmatprep.subr.mxu0 0.0
    %183 = vmatpush1.msra.mxu0 0.0
    %184 = vmatprep.subr.mxu0 0.0
    %185 = vmatpush1.msra.mxu0 0.0
    %186 = vmatprep.subr.mxu0 0.0
    %187 = vmatpush1.msra.mxu0 0.0
    %188 = vmatprep.mubr.f32.mxu0 0.0
    %189 = vmatmul.mubr.f32.gmra.mrb[0].mxu0 %v113
    %v190 = vpop.f32.mrb[0].mxu0
    %v191 = vadd.f32 %v104, %v190
    %v192 = vpop.f32.mrb[0].mxu0
    %v193 = vadd.f32 %v108, %v192
    %194 = vmatprep.mubr.f32.mxu0 0.0
    %195 = vmatmul.mubr.f32.gmra.mrb[0].mxu0 %v116
    %v196 = vpop.f32.mrb[0].mxu0
    %v197 = vadd.f32 %v104, %v196
    %v198 = vpop.f32.mrb[0].mxu0
    %v199 = vadd.f32 %v108, %v198
    %200 = vmatprep.mubr.f32.mxu0 0.0
    %201 = vmatmul.mubr.f32.gmra.mrb[0].mxu0 %v119
    %v202 = vpop.f32.mrb[0].mxu0
    %v203 = vadd.f32 %v104, %v202
    %v204 = vpop.f32.mrb[0].mxu0
    %v205 = vadd.f32 %v108, %v204
    %206 = vmatprep.mubr.f32.mxu0 0.0
    %207 = vmatmul.mubr.f32.gmra.mrb[0].mxu0 %v122
    %v208 = vpop.f32.mrb[0].mxu0
    %v209 = vadd.f32 %v104, %v208
    %v210 = vpop.f32.mrb[0].mxu0
    %v211 = vadd.f32 %v108, %v210
    %212 = vdwg.mxu0
    %v213 = vxor.u32 %v191, 2147483648
    %v214 = vxor.u32 %v193, 2147483648
    %v215 = vxor.u32 %v197, 2147483648
    %v216 = vxor.u32 %v199, 2147483648
    %v217 = vxor.u32 %v203, 2147483648
    %v218 = vxor.u32 %v205, 2147483648
    %v219 = vxor.u32 %v209, 2147483648
    %v220 = vxor.u32 %v211, 2147483648
    %v221 = vmul.f32 %v213, 1.442695
    %v222 = vpow.pop %v221
    %v223 = vmul.f32 %v214, 1.442695
    %v224 = vpow.pop %v223
    %v225 = vmul.f32 %v215, 1.442695
    %v226 = vpow.pop %v225
    %v227 = vmul.f32 %v216, 1.442695
    %v228 = vpow.pop %v227
    %v229 = vmul.f32 %v217, 1.442695
    %v230 = vpow.pop %v229
    %v231 = vmul.f32 %v218, 1.442695
    %v232 = vpow.pop %v231
    %v233 = vmul.f32 %v219, 1.442695
    %v234 = vpow.pop %v233
    %v235 = vmul.f32 %v220, 1.442695
    %v236 = vpow.pop %v235
    %v237 = vadd.f32 %v222, 1.0
    %v238 = vadd.f32 %v224, 1.0
    %v239 = vadd.f32 %v226, 1.0
    %v240 = vadd.f32 %v228, 1.0
    %v241 = vadd.f32 %v230, 1.0
    %v242 = vadd.f32 %v232, 1.0
    %v243 = vadd.f32 %v234, 1.0
    %v244 = vadd.f32 %v236, 1.0
    %v245 = vrcp.pop %v237
    %v246 = vmul.f32 1.0, %v245
    %v247 = vrcp.pop %v238
    %v248 = vmul.f32 1.0, %v247
    %v249 = vrcp.pop %v239
    %v250 = vmul.f32 1.0, %v249
    %v251 = vrcp.pop %v240
    %v252 = vmul.f32 1.0, %v251
    %v253 = vrcp.pop %v241
    %v254 = vmul.f32 1.0, %v253
    %v255 = vrcp.pop %v242
    %v256 = vmul.f32 1.0, %v255
    %v257 = vrcp.pop %v243
    %v258 = vmul.f32 1.0, %v257
    %v259 = vrcp.pop %v244
    %v260 = vmul.f32 1.0, %v259
    %v261 = vmul.f32 %v191, %v246
    %v262 = vmul.f32 %v193, %v248
    %v263 = vmul.f32 %v197, %v250
    %v264 = vmul.f32 %v199, %v252
    %v265 = vmul.f32 %v203, %v254
    %v266 = vmul.f32 %v205, %v256
    %v267 = vmul.f32 %v209, %v258
    %v268 = vmul.f32 %v211, %v260
    %v269 = vld [vmem:[#allocation8] sm:$0xff]
    %v270 = vld [vmem:[#allocation8 + $0x8] sm:$0xff]
    %v271 = vld [vmem:[#allocation8 + $0x10] sm:$0xff]
    %v272 = vld [vmem:[#allocation8 + $0x18] sm:$0xff]
    %v273 = vld [vmem:[#allocation8 + $0x20] sm:$0xff]
    %v274 = vld [vmem:[#allocation8 + $0x28] sm:$0xff]
    %v275 = vld [vmem:[#allocation8 + $0x30] sm:$0xff]
    %v276 = vld [vmem:[#allocation8 + $0x38] sm:$0xff]
    %v277 = vld [vmem:[#allocation8 + $0x40] sm:$0xff]
    %v278 = vld [vmem:[#allocation8 + $0x48] sm:$0xff]
    %v279 = vld [vmem:[#allocation8 + $0x50] sm:$0xff]
    %v280 = vld [vmem:[#allocation8 + $0x58] sm:$0xff]
    %v281 = vld [vmem:[#allocation8 + $0x60] sm:$0xff]
    %v282 = vld [vmem:[#allocation8 + $0x68] sm:$0xff]
    %v283 = vld [vmem:[#allocation8 + $0x70] sm:$0xff]
    %v284 = vld [vmem:[#allocation8 + $0x78] sm:$0xff]
    %v285 = vld [vmem:[#allocation8 + $0x80] sm:$0xff]
    %v286 = vld [vmem:[#allocation8 + $0x88] sm:$0xff]
    %v287 = vld [vmem:[#allocation8 + $0x90] sm:$0xff]
    %v288 = vld [vmem:[#allocation8 + $0x98] sm:$0xff]
    %v289 = vld [vmem:[#allocation8 + $0xa0] sm:$0xff]
    %v290 = vld [vmem:[#allocation8 + $0xa8] sm:$0xff]
    %v291 = vld [vmem:[#allocation8 + $0xb0] sm:$0xff]
    %v292 = vld [vmem:[#allocation8 + $0xb8] sm:$0xff]
    %v293 = vld [vmem:[#allocation8 + $0xc0] sm:$0xff]
    %v294 = vld [vmem:[#allocation8 + $0xc8] sm:$0xff]
    %v295 = vld [vmem:[#allocation8 + $0xd0] sm:$0xff]
    %v296 = vld [vmem:[#allocation8 + $0xd8] sm:$0xff]
    %v297 = vld [vmem:[#allocation8 + $0xe0] sm:$0xff]
    %v298 = vld [vmem:[#allocation8 + $0xe8] sm:$0xff]
    %v299 = vld [vmem:[#allocation8 + $0xf0] sm:$0xff]
    %v300 = vld [vmem:[#allocation8 + $0xf8] sm:$0xff]
    %v301 = vld [vmem:[#allocation8 + $0x100] sm:$0xff]
    %v302 = vld [vmem:[#allocation8 + $0x108] sm:$0xff]
    %v303 = vld [vmem:[#allocation8 + $0x110] sm:$0xff]
    %v304 = vld [vmem:[#allocation8 + $0x118] sm:$0xff]
    %v305 = vld [vmem:[#allocation8 + $0x120] sm:$0xff]
    %v306 = vld [vmem:[#allocation8 + $0x128] sm:$0xff]
    %v307 = vld [vmem:[#allocation8 + $0x130] sm:$0xff]
    %v308 = vld [vmem:[#allocation8 + $0x138] sm:$0xff]
    %v309 = vld [vmem:[#allocation8 + $0x140] sm:$0xff]
    %v310 = vld [vmem:[#allocation8 + $0x148] sm:$0xff]
    %v311 = vld [vmem:[#allocation8 + $0x150] sm:$0xff]
    %v312 = vld [vmem:[#allocation8 + $0x158] sm:$0xff]
    %v313 = vld [vmem:[#allocation8 + $0x160] sm:$0xff]
    %v314 = vld [vmem:[#allocation8 + $0x168] sm:$0xff]
    %v315 = vld [vmem:[#allocation8 + $0x170] sm:$0xff]
    %v316 = vld [vmem:[#allocation8 + $0x178] sm:$0xff]
    %v317 = vld [vmem:[#allocation8 + $0x180] sm:$0xff]
    %v318 = vld [vmem:[#allocation8 + $0x188] sm:$0xff]
    %v319 = vld [vmem:[#allocation8 + $0x190] sm:$0xff]
    %v320 = vld [vmem:[#allocation8 + $0x198] sm:$0xff]
    %v321 = vld [vmem:[#allocation8 + $0x1a0] sm:$0xff]
    %v322 = vld [vmem:[#allocation8 + $0x1a8] sm:$0xff]
    %v323 = vld [vmem:[#allocation8 + $0x1b0] sm:$0xff]
    %v324 = vld [vmem:[#allocation8 + $0x1b8] sm:$0xff]
    %v325 = vld [vmem:[#allocation8 + $0x1c0] sm:$0xff]
    %v326 = vld [vmem:[#allocation8 + $0x1c8] sm:$0xff]
    %v327 = vld [vmem:[#allocation8 + $0x1d0] sm:$0xff]
    %v328 = vld [vmem:[#allocation8 + $0x1d8] sm:$0xff]
    %v329 = vld [vmem:[#allocation8 + $0x1e0] sm:$0xff]
    %v330 = vld [vmem:[#allocation8 + $0x1e8] sm:$0xff]
    %v331 = vld [vmem:[#allocation8 + $0x1f0] sm:$0xff]
    %v332 = vld [vmem:[#allocation8 + $0x1f8] sm:$0xff]
    %v333 = vld [vmem:[%s5] sm:$0x3]
    %v335 = vlaneseq
    %v336 = vshrl.u32 %v335, 7
    %v337 = vsub.s32 0, %v336
    %v338 = vrot.slane %v333, %v337
    %v339 = vlaneseq
    %v340 = vshrl.u32 %v339, 7
    %v341 = vsub.s32 1, %v340
    %v342 = vrot.slane %v333, %v341
    %345 = vmatprep.subr.mxu0 %v270
    %346 = vmatpush1.msra.mxu0 %v269
    %347 = vmatprep.subr.mxu0 %v272
    %348 = vmatpush1.msra.mxu0 %v271
    %349 = vmatprep.subr.mxu0 %v274
    %350 = vmatpush1.msra.mxu0 %v273
    %351 = vmatprep.subr.mxu0 %v276
    %352 = vmatpush1.msra.mxu0 %v275
    %353 = vmatprep.subr.mxu0 %v278
    %354 = vmatpush1.msra.mxu0 %v277
    %355 = vmatprep.subr.mxu0 %v280
    %356 = vmatpush1.msra.mxu0 %v279
    %357 = vmatprep.subr.mxu0 %v282
    %358 = vmatpush1.msra.mxu0 %v281
    %359 = vmatprep.subr.mxu0 %v284
    %360 = vmatpush1.msra.mxu0 %v283
    %361 = vmatprep.subr.mxu0 %v286
    %362 = vmatpush1.msra.mxu0 %v285
    %363 = vmatprep.subr.mxu0 %v288
    %364 = vmatpush1.msra.mxu0 %v287
    %365 = vmatprep.subr.mxu0 %v290
    %366 = vmatpush1.msra.mxu0 %v289
    %367 = vmatprep.subr.mxu0 %v292
    %368 = vmatpush1.msra.mxu0 %v291
    %369 = vmatprep.subr.mxu0 %v294
    %370 = vmatpush1.msra.mxu0 %v293
    %371 = vmatprep.subr.mxu0 %v296
    %372 = vmatpush1.msra.mxu0 %v295
    %373 = vmatprep.subr.mxu0 %v298
    %374 = vmatpush1.msra.mxu0 %v297
    %375 = vmatprep.subr.mxu0 %v300
    %376 = vmatpush1.msra.mxu0 %v299
    %377 = vmatprep.subr.mxu0 %v302
    %378 = vmatpush1.msra.mxu0 %v301
    %379 = vmatprep.subr.mxu0 %v304
    %380 = vmatpush1.msra.mxu0 %v303
    %381 = vmatprep.subr.mxu0 %v306
    %382 = vmatpush1.msra.mxu0 %v305
    %383 = vmatprep.subr.mxu0 %v308
    %384 = vmatpush1.msra.mxu0 %v307
    %385 = vmatprep.subr.mxu0 %v310
    %386 = vmatpush1.msra.mxu0 %v309
    %387 = vmatprep.subr.mxu0 %v312
    %388 = vmatpush1.msra.mxu0 %v311
    %389 = vmatprep.subr.mxu0 %v314
    %390 = vmatpush1.msra.mxu0 %v313
    %391 = vmatprep.subr.mxu0 %v316
    %392 = vmatpush1.msra.mxu0 %v315
    %393 = vmatprep.subr.mxu0 %v318
    %394 = vmatpush1.msra.mxu0 %v317
    %395 = vmatprep.subr.mxu0 %v320
    %396 = vmatpush1.msra.mxu0 %v319
    %397 = vmatprep.subr.mxu0 %v322
    %398 = vmatpush1.msra.mxu0 %v321
    %399 = vmatprep.subr.mxu0 %v324
    %400 = vmatpush1.msra.mxu0 %v323
    %401 = vmatprep.subr.mxu0 %v326
    %402 = vmatpush1.msra.mxu0 %v325
    %403 = vmatprep.subr.mxu0 %v328
    %404 = vmatpush1.msra.mxu0 %v327
    %405 = vmatprep.subr.mxu0 %v330
    %406 = vmatpush1.msra.mxu0 %v329
    %407 = vmatprep.subr.mxu0 %v332
    %408 = vmatpush1.msra.mxu0 %v331
    %409 = vmatprep.mubr.f32.mxu0 %v262
    %410 = vmatmul.mubr.f32.gmra.mrb[0].mxu0 %v261
    %v411 = vpop.f32.mrb[0].mxu0
    %v412 = vadd.f32 %v338, %v411
    %v413 = vpop.f32.mrb[0].mxu0
    %v414 = vadd.f32 %v342, %v413
    %415 = vmatprep.mubr.f32.mxu0 %v264
    %416 = vmatmul.mubr.f32.gmra.mrb[0].mxu0 %v263
    %v417 = vpop.f32.mrb[0].mxu0
    %v418 = vadd.f32 %v338, %v417
    %v419 = vpop.f32.mrb[0].mxu0
    %v420 = vadd.f32 %v342, %v419
    %421 = vmatprep.mubr.f32.mxu0 %v266
    %422 = vmatmul.mubr.f32.gmra.mrb[0].mxu0 %v265
    %v423 = vpop.f32.mrb[0].mxu0
    %v424 = vadd.f32 %v338, %v423
    %v425 = vpop.f32.mrb[0].mxu0
    %v426 = vadd.f32 %v342, %v425
    %427 = vmatprep.mubr.f32.mxu0 %v268
    %428 = vmatmul.mubr.f32.gmra.mrb[0].mxu0 %v267
    %v429 = vpop.f32.mrb[0].mxu0
    %v430 = vadd.f32 %v338, %v429
    %v431 = vpop.f32.mrb[0].mxu0
    %v432 = vadd.f32 %v342, %v431
    %433 = vdwg.mxu0
    %v434 = vld [vmem:[#allocation2] sm:$0xff]
    %v435 = vld [vmem:[#allocation2 + $0x8] sm:$0xff]
    %v436 = vld [vmem:[#allocation2 + $0x10] sm:$0xff]
    %v437 = vld [vmem:[#allocation2 + $0x18] sm:$0xff]
    %438 = vadd.xlane.f32.xlu0 %v434
    %v439 = vpop.xlane.xlu0 %438
    %440 = vadd.xlane.f32.xlu0 %v435
    %v441 = vpop.xlane.xlu0 %440
    %442 = vadd.xlane.f32.xlu0 %v436
    %v443 = vpop.xlane.xlu0 %442
    %444 = vadd.xlane.f32.xlu0 %v437
    %v445 = vpop.xlane.xlu0 %444
    %v446 = vrcp.pop 128.0
    %v447 = vmul.f32 %v439, %v446
    %v448 = vmul.f32 %v441, %v446
    %v449 = vmul.f32 %v443, %v446
    %v450 = vmul.f32 %v445, %v446
    %v451 = vsub.f32 %v434, %v447
    %v452 = vsub.f32 %v435, %v448
    %v453 = vsub.f32 %v436, %v449
    %v454 = vsub.f32 %v437, %v450
    %v455 = vmul.f32 %v451, %v451
    %v456 = vmul.f32 %v452, %v452
    %v457 = vmul.f32 %v453, %v453
    %v458 = vmul.f32 %v454, %v454
    %459 = vadd.xlane.f32.xlu0 %v455
    %v460 = vpop.xlane.xlu0 %459
    %461 = vadd.xlane.f32.xlu0 %v456
    %v462 = vpop.xlane.xlu0 %461
    %463 = vadd.xlane.f32.xlu0 %v457
    %v464 = vpop.xlane.xlu0 %463
    %465 = vadd.xlane.f32.xlu0 %v458
    %v466 = vpop.xlane.xlu0 %465
    %v467 = vmul.f32 %v460, %v446
    %v468 = vmul.f32 %v462, %v446
    %v469 = vmul.f32 %v464, %v446
    %v470 = vmul.f32 %v466, %v446
    %v471 = vadd.f32 %v467, 1e-05
    %v472 = vadd.f32 %v468, 1e-05
    %v473 = vadd.f32 %v469, 1e-05
    %v474 = vadd.f32 %v470, 1e-05
    %v475 = vrsqrt.pop %v471
    %v476 = vrsqrt.pop %v472
    %v477 = vrsqrt.pop %v473
    %v478 = vrsqrt.pop %v474
    %v479 = vmul.f32 %v451, %v475
    %v480 = vmul.f32 %v452, %v476
    %v481 = vmul.f32 %v453, %v477
    %v482 = vmul.f32 %v454, %v478
    %v483 = vmul.f32 %v479, %v412
    %v484 = vmul.f32 %v480, %v418
    %v485 = vmul.f32 %v481, %v424
    %v486 = vmul.f32 %v482, %v430
    %v487 = vadd.f32 %v483, %v414
    %v488 = vadd.f32 %v484, %v420
    %v489 = vadd.f32 %v485, %v426
    %v490 = vadd.f32 %v486, %v432
    %491 = vst [vmem:[#allocation10] sm:$0xff] %v487
    %492 = vst [vmem:[#allocation10 + $0x8] sm:$0xff] %v488
    %493 = vst [vmem:[#allocation10 + $0x10] sm:$0xff] %v489
    %494 = vst [vmem:[#allocation10 + $0x18] sm:$0xff] %v490
    // Predicated region
    $region42: #{tpu_custom_call.1} parent=1 // pred_check
      _
    $region43: #{tpu_custom_call.1} parent=1 // pred_check_branch
      %496 = sbr.rel (0) target = $region45
    $region44: #{tpu_custom_call.1} parent=1 // pred_region
      %s498 = ssub.s32 512, 512
      %499 = vsyncadd [#allocation4], %s498
      %s500 = sshll.u32 [#allocation10], 4
      %s501 = int_to_ptr.vmem [resolvable:$true] %s500
      %506 = dma.vmem_to_hbm [thread:$0]  %s501, 512, %s6, [#allocation4], 128, 128, 8
    $region45: #{tpu_custom_call.1} parent=1 // pred_fallthru
      _
    // Predicated region
    $region46: #{tpu_custom_call.1} parent=1 // pred_check
      _
    $region47: #{tpu_custom_call.1} parent=1 // pred_check_branch
      %508 = sbr.rel (0) target = $region49
    $region48: #{tpu_custom_call.1} parent=1 // pred_region
      %509 = dma.done [#allocation4], 512
    $region49: #{tpu_custom_call.1} parent=1 // pred_fallthru
      _
    %510 = vsyncpa [#allocation3], 1
    %511 = vsyncpa [#allocation6], 1
    %512 = vsyncpa [#allocation9], 1
    %513 = vsyncpa [#allocation4], 1

</llo_original>
